<compile_context>
chip_gen: v5e
topology: v5e:2x2
jax: 0.10.0
libtpu: 0.0.40
codegen_flags: <defaults>
</compile_context>

<pallas_src>
import functools

import jax
import jax.numpy as jnp
from jax import lax
from jax.experimental import pallas as pl
from jax.experimental.pallas import tpu as pltpu


def last_layer4_kernel(x_ref, mask_ref, w_ref, b_ref, o_ref, *, W, K, L):
    """One grid step: a (C, L) lane-dense slab holding NB images (L = NB*H*W).

    x_ref:    (C, L)             activations, channel-first, lane-dense.
    mask_ref: (K*K, C, L) f32    per-tap in-image mask (1.0 valid / 0.0 pad),
                                 precomputed + tiled per image in the wrapper.
    w_ref:    (3, C, K*K*C)      the three conv weights as im2col matrices.
    b_ref:    (3, C, 1)          the three conv biases.
    o_ref:    (C, L)             output slab (residual-branch result).
    """
    P = K // 2
    x = x_ref[...].astype(jnp.float32)                      # (C, L)

    # Static (lane-rotation, tap-index) pairs, shared by all three convs.
    taps = []
    for kh in range(K):
        for kw in range(K):
            d = (kh - P) * W + (kw - P)                     # signed lane offset
            taps.append(((-d) % L, kh * K + kw))

    def conv(x, layer, relu):
        # im2col: 9 XLU lane-rotations + NaN-safe masked selects, then ONE
        # MXU matmul (C, K*K*C) x (K*K*C, L) with f32 accumulation.
        parts = []
        for shift, t in taps:
            shifted = pltpu.roll(x, shift, axis=1) if shift else x
            parts.append(jnp.where(mask_ref[t] != 0.0, shifted, 0.0))
        patches = jnp.concatenate(parts, axis=0)            # (K*K*C, L)
        y = jnp.dot(w_ref[layer], patches,
                    preferred_element_type=jnp.float32) + b_ref[layer]
        if relu:
            y = jnp.maximum(y, 0.0)
        return y                                            # (C, L) f32

    y = conv(x, 0, relu=True)    # conv1 + ReLU
    y = conv(y, 1, relu=False)   # conv2
    y = conv(y, 2, relu=False)   # conv3
    o_ref[...] = y.astype(o_ref.dtype)


def last_layer4_res(x_nchw, w1, b1, w2, b2, w3, b3, *, grid_steps=None):
    """Applies the 3-conv residual branch.

    x_nchw: (N, C, H, W) float32 (PyTorch NCHW layout).
    w*: (K, K, C_in, C_out) HWIO, b*: (C,).
    """
    N, C, H, W = x_nchw.shape
    K = w1.shape[0]
    HW = H * W
    KK = K * K
    KKC = KK * C
    P = K // 2

    if grid_steps is None:
        # >=2 steps feeds both TensorCores on v7x; the single extra ~0.35us
        # step on single-TC v5e/v6e is negligible at these sizes.
        grid_steps = min(N, 2)
    NB = -(-N // grid_steps)            # images per grid step
    steps = -(-N // NB)
    Np = steps * NB
    L = NB * HW

    # Channel-first, lane-dense layout: (C, Np*HW). Tiny tensors -> the
    # transpose/pad are cheap XLA ops outside the kernel.
    x = x_nchw.reshape(N, C, HW)
    if Np != N:
        x = jnp.pad(x, ((0, Np - N), (0, 0), (0, 0)))
    x_cl = jnp.transpose(x, (1, 0, 2)).reshape(C, Np * HW)

    # Per-tap validity masks ("same" zero padding), hoisted out of the kernel.
    # Built per image, tiled across the NB images of a slab, broadcast over C.
    idx = jnp.arange(HW, dtype=jnp.int32)
    hh = idx // W
    ww = idx % W
    rows = []
    for kh in range(K):
        for kw in range(K):
            dh, dw = kh - P, kw - P
            rows.append((hh + dh >= 0) & (hh + dh < H) &
                        (ww + dw >= 0) & (ww + dw < W))
    mask_img = jnp.stack(rows, axis=0).astype(jnp.float32)       # (K*K, HW)
    mask = jnp.tile(mask_img, (1, NB))                           # (K*K, L)
    mask = jnp.broadcast_to(mask[:, None, :], (KK, C, L))        # (K*K, C, L)

    def wmat(w):
        # HWIO (K,K,Cin,Cout) -> (Cout, K*K*Cin); tap-major, cin-minor,
        # matching the im2col stack order used in the kernel.
        return w.reshape(KKC, C).T

    w_all = jnp.stack([wmat(w1), wmat(w2), wmat(w3)], axis=0)    # (3, C, KKC)
    b_all = jnp.stack([b1, b2, b3], axis=0).reshape(3, C, 1)     # (3, C, 1)

    kernel = functools.partial(last_layer4_kernel, W=W, K=K, L=L)

    xspec = pl.BlockSpec((C, L), lambda n: (0, n))

    def const_spec(*shape):
        return pl.BlockSpec(tuple(shape), lambda n, _s=len(shape): (0,) * _s)

    out = pl.pallas_call(
        kernel,
        out_shape=jax.ShapeDtypeStruct((C, Np * HW), x_nchw.dtype),
        grid=(steps,),
        in_specs=[xspec,
                  const_spec(KK, C, L),
                  const_spec(3, C, KKC),
                  const_spec(3, C, 1)],
        out_specs=xspec,
        compiler_params=pltpu.CompilerParams(dimension_semantics=("parallel",)),
    )(x_cl, mask, w_all, b_all)

    out = out.reshape(C, Np, HW)
    out = jnp.transpose(out, (1, 0, 2))[:N]
    return out.reshape(N, C, H, W)


def last_layer4_forward(xs, params):
    """xs = [x0, x1, x2] (NCHW); only x0 goes through the conv branch."""
    (w1, b1), (w2, b2), (w3, b3) = params
    out0 = last_layer4_res(xs[0], w1, b1, w2, b2, w3, b3)
    return [out0, xs[1], xs[2]]


def _reference_res(x, params):
    """Pure-JAX reference (NCHW / HWIO conv) for correctness checking."""
    dn = ("NCHW", "HWIO", "NCHW")
    (w1, b1), (w2, b2), (w3, b3) = params
    y = lax.conv_general_dilated(x, w1, (1, 1), "SAME",
                                 dimension_numbers=dn) + b1[None, :, None, None]
    y = jnp.maximum(y, 0.0)
    y = lax.conv_general_dilated(y, w2, (1, 1), "SAME",
                                 dimension_numbers=dn) + b2[None, :, None, None]
    y = lax.conv_general_dilated(y, w3, (1, 1), "SAME",
                                 dimension_numbers=dn) + b3[None, :, None, None]
    return y


if __name__ == "__main__":
    # Small shapes consistent with the module: n_feats=4, kernel_size=3.
    N, C, H, W, K = 2, 4, 16, 16, 3

    key = jax.random.PRNGKey(0)
    keys = jax.random.split(key, 9)

    x0 = jax.random.normal(keys[0], (N, C, H, W), jnp.float32)
    x1 = jax.random.normal(keys[1], (N, C, H, W), jnp.float32)  # pass-through
    x2 = jax.random.normal(keys[2], (N, C, H, W), jnp.float32)  # pass-through

    def init_conv(kw_key, kb_key):
        fan_in = C * K * K
        scale = 1.0 / jnp.sqrt(fan_in)
        w = jax.random.uniform(kw_key, (K, K, C, C), jnp.float32, -scale, scale)
        b = jax.random.uniform(kb_key, (C,), jnp.float32, -scale, scale)
        return w, b

    params = [init_conv(keys[3], keys[4]),
              init_conv(keys[5], keys[6]),
              init_conv(keys[7], keys[8])]

    outputs = last_layer4_forward([x0, x1, x2], params)
    outputs = [jax.block_until_ready(o) for o in outputs]

    ref0 = _reference_res(x0, params)
    assert jnp.allclose(outputs[0], ref0, atol=1e-4, rtol=1e-4), "conv mismatch"
    assert jnp.array_equal(outputs[1], x1) and jnp.array_equal(outputs[2], x2)

    print("KERNEL_OK")
</pallas_src>

<mosaic_0001>
module attributes {stable_mosaic.version = 11 : i64} {
  func.func @last_layer4_kernel(%arg0: i32, %arg1: memref<4x256xf32, #tpu.memory_space<vmem>>, %arg2: memref<9x4x256xf32, #tpu.memory_space<vmem>>, %arg3: memref<3x4x36xf32, #tpu.memory_space<vmem>>, %arg4: memref<3x4x1xf32, #tpu.memory_space<vmem>>, %arg5: memref<4x256xf32, #tpu.memory_space<vmem>>) attributes {dimension_semantics = [#tpu.dimension_semantics<parallel>], iteration_bounds = array<i64: 2>, scalar_prefetch = 0 : i64, scratch_operands = 0 : i64, tpu.core_type = #tpu.core_type<tc>, window_params = [{transform_indices = @transform_0, window_bounds = array<i64: 4, 256>}, {pipeline_mode = #tpu.pipeline_mode<synchronous>, transform_indices = @transform_1, window_bounds = array<i64: 9, 4, 256>}, {pipeline_mode = #tpu.pipeline_mode<synchronous>, transform_indices = @transform_2, window_bounds = array<i64: 3, 4, 36>}, {pipeline_mode = #tpu.pipeline_mode<synchronous>, transform_indices = @transform_3, window_bounds = array<i64: 3, 4, 1>}, {transform_indices = @transform_4, window_bounds = array<i64: 4, 256>}]} {
    %c0 = arith.constant 0 : index
    %c0_0 = arith.constant 0 : index
    %0 = vector.load %arg1[%c0, %c0_0] : memref<4x256xf32, #tpu.memory_space<vmem>>, vector<4x256xf32>
    %c17_i32 = arith.constant 17 : i32
    %1 = tpu.dynamic_rotate %0 by %c17_i32 dim 1 : vector<4x256xf32>, i32 -> vector<4x256xf32>
    %c0_1 = arith.constant 0 : index
    %c0_2 = arith.constant 0 : index
    %c0_3 = arith.constant 0 : index
    %2 = vector.load %arg2[%c0_1, %c0_2, %c0_3] : memref<9x4x256xf32, #tpu.memory_space<vmem>>, vector<1x4x256xf32>
    %3 = vector.shape_cast %2 : vector<1x4x256xf32> to vector<4x256xf32>
    %cst = arith.constant 0.000000e+00 : f32
    %4 = vector.broadcast %cst : f32 to vector<4x256xf32>
    %5 = arith.cmpf one, %3, %4 : vector<4x256xf32>
    %cst_4 = arith.constant 0.000000e+00 : f32
    %6 = vector.broadcast %cst_4 : f32 to vector<4x256xf32>
    %7 = arith.select %5, %1, %6 : vector<4x256xi1>, vector<4x256xf32>
    %c16_i32 = arith.constant 16 : i32
    %8 = tpu.dynamic_rotate %0 by %c16_i32 dim 1 : vector<4x256xf32>, i32 -> vector<4x256xf32>
    %c1 = arith.constant 1 : index
    %c0_5 = arith.constant 0 : index
    %c0_6 = arith.constant 0 : index
    %9 = vector.load %arg2[%c1, %c0_5, %c0_6] : memref<9x4x256xf32, #tpu.memory_space<vmem>>, vector<1x4x256xf32>
    %10 = vector.shape_cast %9 : vector<1x4x256xf32> to vector<4x256xf32>
    %cst_7 = arith.constant 0.000000e+00 : f32
    %11 = vector.broadcast %cst_7 : f32 to vector<4x256xf32>
    %12 = arith.cmpf one, %10, %11 : vector<4x256xf32>
    %cst_8 = arith.constant 0.000000e+00 : f32
    %13 = vector.broadcast %cst_8 : f32 to vector<4x256xf32>
    %14 = arith.select %12, %8, %13 : vector<4x256xi1>, vector<4x256xf32>
    %c15_i32 = arith.constant 15 : i32
    %15 = tpu.dynamic_rotate %0 by %c15_i32 dim 1 : vector<4x256xf32>, i32 -> vector<4x256xf32>
    %c2 = arith.constant 2 : index
    %c0_9 = arith.constant 0 : index
    %c0_10 = arith.constant 0 : index
    %16 = vector.load %arg2[%c2, %c0_9, %c0_10] : memref<9x4x256xf32, #tpu.memory_space<vmem>>, vector<1x4x256xf32>
    %17 = vector.shape_cast %16 : vector<1x4x256xf32> to vector<4x256xf32>
    %cst_11 = arith.constant 0.000000e+00 : f32
    %18 = vector.broadcast %cst_11 : f32 to vector<4x256xf32>
    %19 = arith.cmpf one, %17, %18 : vector<4x256xf32>
    %cst_12 = arith.constant 0.000000e+00 : f32
    %20 = vector.broadcast %cst_12 : f32 to vector<4x256xf32>
    %21 = arith.select %19, %15, %20 : vector<4x256xi1>, vector<4x256xf32>
    %c1_i32 = arith.constant 1 : i32
    %22 = tpu.dynamic_rotate %0 by %c1_i32 dim 1 : vector<4x256xf32>, i32 -> vector<4x256xf32>
    %c3 = arith.constant 3 : index
    %c0_13 = arith.constant 0 : index
    %c0_14 = arith.constant 0 : index
    %23 = vector.load %arg2[%c3, %c0_13, %c0_14] : memref<9x4x256xf32, #tpu.memory_space<vmem>>, vector<1x4x256xf32>
    %24 = vector.shape_cast %23 : vector<1x4x256xf32> to vector<4x256xf32>
    %cst_15 = arith.constant 0.000000e+00 : f32
    %25 = vector.broadcast %cst_15 : f32 to vector<4x256xf32>
    %26 = arith.cmpf one, %24, %25 : vector<4x256xf32>
    %cst_16 = arith.constant 0.000000e+00 : f32
    %27 = vector.broadcast %cst_16 : f32 to vector<4x256xf32>
    %28 = arith.select %26, %22, %27 : vector<4x256xi1>, vector<4x256xf32>
    %c4 = arith.constant 4 : index
    %c0_17 = arith.constant 0 : index
    %c0_18 = arith.constant 0 : index
    %29 = vector.load %arg2[%c4, %c0_17, %c0_18] : memref<9x4x256xf32, #tpu.memory_space<vmem>>, vector<1x4x256xf32>
    %30 = vector.shape_cast %29 : vector<1x4x256xf32> to vector<4x256xf32>
    %cst_19 = arith.constant 0.000000e+00 : f32
    %31 = vector.broadcast %cst_19 : f32 to vector<4x256xf32>
    %32 = arith.cmpf one, %30, %31 : vector<4x256xf32>
    %cst_20 = arith.constant 0.000000e+00 : f32
    %33 = vector.broadcast %cst_20 : f32 to vector<4x256xf32>
    %34 = arith.select %32, %0, %33 : vector<4x256xi1>, vector<4x256xf32>
    %c255_i32 = arith.constant 255 : i32
    %35 = tpu.dynamic_rotate %0 by %c255_i32 dim 1 : vector<4x256xf32>, i32 -> vector<4x256xf32>
    %c5 = arith.constant 5 : index
    %c0_21 = arith.constant 0 : index
    %c0_22 = arith.constant 0 : index
    %36 = vector.load %arg2[%c5, %c0_21, %c0_22] : memref<9x4x256xf32, #tpu.memory_space<vmem>>, vector<1x4x256xf32>
    %37 = vector.shape_cast %36 : vector<1x4x256xf32> to vector<4x256xf32>
    %cst_23 = arith.constant 0.000000e+00 : f32
    %38 = vector.broadcast %cst_23 : f32 to vector<4x256xf32>
    %39 = arith.cmpf one, %37, %38 : vector<4x256xf32>
    %cst_24 = arith.constant 0.000000e+00 : f32
    %40 = vector.broadcast %cst_24 : f32 to vector<4x256xf32>
    %41 = arith.select %39, %35, %40 : vector<4x256xi1>, vector<4x256xf32>
    %c241_i32 = arith.constant 241 : i32
    %42 = tpu.dynamic_rotate %0 by %c241_i32 dim 1 : vector<4x256xf32>, i32 -> vector<4x256xf32>
    %c6 = arith.constant 6 : index
    %c0_25 = arith.constant 0 : index
    %c0_26 = arith.constant 0 : index
    %43 = vector.load %arg2[%c6, %c0_25, %c0_26] : memref<9x4x256xf32, #tpu.memory_space<vmem>>, vector<1x4x256xf32>
    %44 = vector.shape_cast %43 : vector<1x4x256xf32> to vector<4x256xf32>
    %cst_27 = arith.constant 0.000000e+00 : f32
    %45 = vector.broadcast %cst_27 : f32 to vector<4x256xf32>
    %46 = arith.cmpf one, %44, %45 : vector<4x256xf32>
    %cst_28 = arith.constant 0.000000e+00 : f32
    %47 = vector.broadcast %cst_28 : f32 to vector<4x256xf32>
    %48 = arith.select %46, %42, %47 : vector<4x256xi1>, vector<4x256xf32>
    %c240_i32 = arith.constant 240 : i32
    %49 = tpu.dynamic_rotate %0 by %c240_i32 dim 1 : vector<4x256xf32>, i32 -> vector<4x256xf32>
    %c7 = arith.constant 7 : index
    %c0_29 = arith.constant 0 : index
    %c0_30 = arith.constant 0 : index
    %50 = vector.load %arg2[%c7, %c0_29, %c0_30] : memref<9x4x256xf32, #tpu.memory_space<vmem>>, vector<1x4x256xf32>
    %51 = vector.shape_cast %50 : vector<1x4x256xf32> to vector<4x256xf32>
    %cst_31 = arith.constant 0.000000e+00 : f32
    %52 = vector.broadcast %cst_31 : f32 to vector<4x256xf32>
    %53 = arith.cmpf one, %51, %52 : vector<4x256xf32>
    %cst_32 = arith.constant 0.000000e+00 : f32
    %54 = vector.broadcast %cst_32 : f32 to vector<4x256xf32>
    %55 = arith.select %53, %49, %54 : vector<4x256xi1>, vector<4x256xf32>
    %c239_i32 = arith.constant 239 : i32
    %56 = tpu.dynamic_rotate %0 by %c239_i32 dim 1 : vector<4x256xf32>, i32 -> vector<4x256xf32>
    %c8 = arith.constant 8 : index
    %c0_33 = arith.constant 0 : index
    %c0_34 = arith.constant 0 : index
    %57 = vector.load %arg2[%c8, %c0_33, %c0_34] : memref<9x4x256xf32, #tpu.memory_space<vmem>>, vector<1x4x256xf32>
    %58 = vector.shape_cast %57 : vector<1x4x256xf32> to vector<4x256xf32>
    %cst_35 = arith.constant 0.000000e+00 : f32
    %59 = vector.broadcast %cst_35 : f32 to vector<4x256xf32>
    %60 = arith.cmpf one, %58, %59 : vector<4x256xf32>
    %cst_36 = arith.constant 0.000000e+00 : f32
    %61 = vector.broadcast %cst_36 : f32 to vector<4x256xf32>
    %62 = arith.select %60, %56, %61 : vector<4x256xi1>, vector<4x256xf32>
    %63 = tpu.concatenate %7, %14, %21, %28, %34, %41, %48, %55, %62 in 0 : vector<4x256xf32>, vector<4x256xf32>, vector<4x256xf32>, vector<4x256xf32>, vector<4x256xf32>, vector<4x256xf32>, vector<4x256xf32>, vector<4x256xf32>, vector<4x256xf32> -> vector<36x256xf32>
    %c0_37 = arith.constant 0 : index
    %c0_38 = arith.constant 0 : index
    %c0_39 = arith.constant 0 : index
    %64 = vector.load %arg3[%c0_37, %c0_38, %c0_39] : memref<3x4x36xf32, #tpu.memory_space<vmem>>, vector<1x4x36xf32>
    %65 = vector.shape_cast %64 : vector<1x4x36xf32> to vector<4x36xf32>
    %cst_40 = arith.constant dense<0.000000e+00> : vector<4x256xf32>
    %66 = tpu.matmul %65, %63, %cst_40 {dimension_numbers = #tpu.dot_dimension_numbers<[1], [0], [0], [1], [0, 0, 1, 1], [], []>} : vector<4x36xf32>, vector<36x256xf32>, vector<4x256xf32> -> vector<4x256xf32>
    %c0_41 = arith.constant 0 : index
    %c0_42 = arith.constant 0 : index
    %c0_43 = arith.constant 0 : index
    %67 = vector.load %arg4[%c0_41, %c0_42, %c0_43] : memref<3x4x1xf32, #tpu.memory_space<vmem>>, vector<1x4x1xf32>
    %68 = vector.shape_cast %67 : vector<1x4x1xf32> to vector<4x1xf32>
    %69 = vector.broadcast %68 : vector<4x1xf32> to vector<4x256xf32>
    %70 = arith.addf %66, %69 : vector<4x256xf32>
    %cst_44 = arith.constant 0.000000e+00 : f32
    %71 = vector.broadcast %cst_44 : f32 to vector<4x256xf32>
    %72 = arith.maximumf %70, %71 : vector<4x256xf32>
    %c17_i32_45 = arith.constant 17 : i32
    %73 = tpu.dynamic_rotate %72 by %c17_i32_45 dim 1 : vector<4x256xf32>, i32 -> vector<4x256xf32>
    %c0_46 = arith.constant 0 : index
    %c0_47 = arith.constant 0 : index
    %c0_48 = arith.constant 0 : index
    %74 = vector.load %arg2[%c0_46, %c0_47, %c0_48] : memref<9x4x256xf32, #tpu.memory_space<vmem>>, vector<1x4x256xf32>
    %75 = vector.shape_cast %74 : vector<1x4x256xf32> to vector<4x256xf32>
    %cst_49 = arith.constant 0.000000e+00 : f32
    %76 = vector.broadcast %cst_49 : f32 to vector<4x256xf32>
    %77 = arith.cmpf one, %75, %76 : vector<4x256xf32>
    %cst_50 = arith.constant 0.000000e+00 : f32
    %78 = vector.broadcast %cst_50 : f32 to vector<4x256xf32>
    %79 = arith.select %77, %73, %78 : vector<4x256xi1>, vector<4x256xf32>
    %c16_i32_51 = arith.constant 16 : i32
    %80 = tpu.dynamic_rotate %72 by %c16_i32_51 dim 1 : vector<4x256xf32>, i32 -> vector<4x256xf32>
    %c1_52 = arith.constant 1 : index
    %c0_53 = arith.constant 0 : index
    %c0_54 = arith.constant 0 : index
    %81 = vector.load %arg2[%c1_52, %c0_53, %c0_54] : memref<9x4x256xf32, #tpu.memory_space<vmem>>, vector<1x4x256xf32>
    %82 = vector.shape_cast %81 : vector<1x4x256xf32> to vector<4x256xf32>
    %cst_55 = arith.constant 0.000000e+00 : f32
    %83 = vector.broadcast %cst_55 : f32 to vector<4x256xf32>
    %84 = arith.cmpf one, %82, %83 : vector<4x256xf32>
    %cst_56 = arith.constant 0.000000e+00 : f32
    %85 = vector.broadcast %cst_56 : f32 to vector<4x256xf32>
    %86 = arith.select %84, %80, %85 : vector<4x256xi1>, vector<4x256xf32>
    %c15_i32_57 = arith.constant 15 : i32
    %87 = tpu.dynamic_rotate %72 by %c15_i32_57 dim 1 : vector<4x256xf32>, i32 -> vector<4x256xf32>
    %c2_58 = arith.constant 2 : index
    %c0_59 = arith.constant 0 : index
    %c0_60 = arith.constant 0 : index
    %88 = vector.load %arg2[%c2_58, %c0_59, %c0_60] : memref<9x4x256xf32, #tpu.memory_space<vmem>>, vector<1x4x256xf32>
    %89 = vector.shape_cast %88 : vector<1x4x256xf32> to vector<4x256xf32>
    %cst_61 = arith.constant 0.000000e+00 : f32
    %90 = vector.broadcast %cst_61 : f32 to vector<4x256xf32>
    %91 = arith.cmpf one, %89, %90 : vector<4x256xf32>
    %cst_62 = arith.constant 0.000000e+00 : f32
    %92 = vector.broadcast %cst_62 : f32 to vector<4x256xf32>
    %93 = arith.select %91, %87, %92 : vector<4x256xi1>, vector<4x256xf32>
    %c1_i32_63 = arith.constant 1 : i32
    %94 = tpu.dynamic_rotate %72 by %c1_i32_63 dim 1 : vector<4x256xf32>, i32 -> vector<4x256xf32>
    %c3_64 = arith.constant 3 : index
    %c0_65 = arith.constant 0 : index
    %c0_66 = arith.constant 0 : index
    %95 = vector.load %arg2[%c3_64, %c0_65, %c0_66] : memref<9x4x256xf32, #tpu.memory_space<vmem>>, vector<1x4x256xf32>
    %96 = vector.shape_cast %95 : vector<1x4x256xf32> to vector<4x256xf32>
    %cst_67 = arith.constant 0.000000e+00 : f32
    %97 = vector.broadcast %cst_67 : f32 to vector<4x256xf32>
    %98 = arith.cmpf one, %96, %97 : vector<4x256xf32>
    %cst_68 = arith.constant 0.000000e+00 : f32
    %99 = vector.broadcast %cst_68 : f32 to vector<4x256xf32>
    %100 = arith.select %98, %94, %99 : vector<4x256xi1>, vector<4x256xf32>
    %c4_69 = arith.constant 4 : index
    %c0_70 = arith.constant 0 : index
    %c0_71 = arith.constant 0 : index
    %101 = vector.load %arg2[%c4_69, %c0_70, %c0_71] : memref<9x4x256xf32, #tpu.memory_space<vmem>>, vector<1x4x256xf32>
    %102 = vector.shape_cast %101 : vector<1x4x256xf32> to vector<4x256xf32>
    %cst_72 = arith.constant 0.000000e+00 : f32
    %103 = vector.broadcast %cst_72 : f32 to vector<4x256xf32>
    %104 = arith.cmpf one, %102, %103 : vector<4x256xf32>
    %cst_73 = arith.constant 0.000000e+00 : f32
    %105 = vector.broadcast %cst_73 : f32 to vector<4x256xf32>
    %106 = arith.select %104, %72, %105 : vector<4x256xi1>, vector<4x256xf32>
    %c255_i32_74 = arith.constant 255 : i32
    %107 = tpu.dynamic_rotate %72 by %c255_i32_74 dim 1 : vector<4x256xf32>, i32 -> vector<4x256xf32>
    %c5_75 = arith.constant 5 : index
    %c0_76 = arith.constant 0 : index
    %c0_77 = arith.constant 0 : index
    %108 = vector.load %arg2[%c5_75, %c0_76, %c0_77] : memref<9x4x256xf32, #tpu.memory_space<vmem>>, vector<1x4x256xf32>
    %109 = vector.shape_cast %108 : vector<1x4x256xf32> to vector<4x256xf32>
    %cst_78 = arith.constant 0.000000e+00 : f32
    %110 = vector.broadcast %cst_78 : f32 to vector<4x256xf32>
    %111 = arith.cmpf one, %109, %110 : vector<4x256xf32>
    %cst_79 = arith.constant 0.000000e+00 : f32
    %112 = vector.broadcast %cst_79 : f32 to vector<4x256xf32>
    %113 = arith.select %111, %107, %112 : vector<4x256xi1>, vector<4x256xf32>
    %c241_i32_80 = arith.constant 241 : i32
    %114 = tpu.dynamic_rotate %72 by %c241_i32_80 dim 1 : vector<4x256xf32>, i32 -> vector<4x256xf32>
    %c6_81 = arith.constant 6 : index
    %c0_82 = arith.constant 0 : index
    %c0_83 = arith.constant 0 : index
    %115 = vector.load %arg2[%c6_81, %c0_82, %c0_83] : memref<9x4x256xf32, #tpu.memory_space<vmem>>, vector<1x4x256xf32>
    %116 = vector.shape_cast %115 : vector<1x4x256xf32> to vector<4x256xf32>
    %cst_84 = arith.constant 0.000000e+00 : f32
    %117 = vector.broadcast %cst_84 : f32 to vector<4x256xf32>
    %118 = arith.cmpf one, %116, %117 : vector<4x256xf32>
    %cst_85 = arith.constant 0.000000e+00 : f32
    %119 = vector.broadcast %cst_85 : f32 to vector<4x256xf32>
    %120 = arith.select %118, %114, %119 : vector<4x256xi1>, vector<4x256xf32>
    %c240_i32_86 = arith.constant 240 : i32
    %121 = tpu.dynamic_rotate %72 by %c240_i32_86 dim 1 : vector<4x256xf32>, i32 -> vector<4x256xf32>
    %c7_87 = arith.constant 7 : index
    %c0_88 = arith.constant 0 : index
    %c0_89 = arith.constant 0 : index
    %122 = vector.load %arg2[%c7_87, %c0_88, %c0_89] : memref<9x4x256xf32, #tpu.memory_space<vmem>>, vector<1x4x256xf32>
    %123 = vector.shape_cast %122 : vector<1x4x256xf32> to vector<4x256xf32>
    %cst_90 = arith.constant 0.000000e+00 : f32
    %124 = vector.broadcast %cst_90 : f32 to vector<4x256xf32>
    %125 = arith.cmpf one, %123, %124 : vector<4x256xf32>
    %cst_91 = arith.constant 0.000000e+00 : f32
    %126 = vector.broadcast %cst_91 : f32 to vector<4x256xf32>
    %127 = arith.select %125, %121, %126 : vector<4x256xi1>, vector<4x256xf32>
    %c239_i32_92 = arith.constant 239 : i32
    %128 = tpu.dynamic_rotate %72 by %c239_i32_92 dim 1 : vector<4x256xf32>, i32 -> vector<4x256xf32>
    %c8_93 = arith.constant 8 : index
    %c0_94 = arith.constant 0 : index
    %c0_95 = arith.constant 0 : index
    %129 = vector.load %arg2[%c8_93, %c0_94, %c0_95] : memref<9x4x256xf32, #tpu.memory_space<vmem>>, vector<1x4x256xf32>
    %130 = vector.shape_cast %129 : vector<1x4x256xf32> to vector<4x256xf32>
    %cst_96 = arith.constant 0.000000e+00 : f32
    %131 = vector.broadcast %cst_96 : f32 to vector<4x256xf32>
    %132 = arith.cmpf one, %130, %131 : vector<4x256xf32>
    %cst_97 = arith.constant 0.000000e+00 : f32
    %133 = vector.broadcast %cst_97 : f32 to vector<4x256xf32>
    %134 = arith.select %132, %128, %133 : vector<4x256xi1>, vector<4x256xf32>
    %135 = tpu.concatenate %79, %86, %93, %100, %106, %113, %120, %127, %134 in 0 : vector<4x256xf32>, vector<4x256xf32>, vector<4x256xf32>, vector<4x256xf32>, vector<4x256xf32>, vector<4x256xf32>, vector<4x256xf32>, vector<4x256xf32>, vector<4x256xf32> -> vector<36x256xf32>
    %c1_98 = arith.constant 1 : index
    %c0_99 = arith.constant 0 : index
    %c0_100 = arith.constant 0 : index
    %136 = vector.load %arg3[%c1_98, %c0_99, %c0_100] : memref<3x4x36xf32, #tpu.memory_space<vmem>>, vector<1x4x36xf32>
    %137 = vector.shape_cast %136 : vector<1x4x36xf32> to vector<4x36xf32>
    %cst_101 = arith.constant dense<0.000000e+00> : vector<4x256xf32>
    %138 = tpu.matmul %137, %135, %cst_101 {dimension_numbers = #tpu.dot_dimension_numbers<[1], [0], [0], [1], [0, 0, 1, 1], [], []>} : vector<4x36xf32>, vector<36x256xf32>, vector<4x256xf32> -> vector<4x256xf32>
    %c1_102 = arith.constant 1 : index
    %c0_103 = arith.constant 0 : index
    %c0_104 = arith.constant 0 : index
    %139 = vector.load %arg4[%c1_102, %c0_103, %c0_104] : memref<3x4x1xf32, #tpu.memory_space<vmem>>, vector<1x4x1xf32>
    %140 = vector.shape_cast %139 : vector<1x4x1xf32> to vector<4x1xf32>
    %141 = vector.broadcast %140 : vector<4x1xf32> to vector<4x256xf32>
    %142 = arith.addf %138, %141 : vector<4x256xf32>
    %c17_i32_105 = arith.constant 17 : i32
    %143 = tpu.dynamic_rotate %142 by %c17_i32_105 dim 1 : vector<4x256xf32>, i32 -> vector<4x256xf32>
    %c0_106 = arith.constant 0 : index
    %c0_107 = arith.constant 0 : index
    %c0_108 = arith.constant 0 : index
    %144 = vector.load %arg2[%c0_106, %c0_107, %c0_108] : memref<9x4x256xf32, #tpu.memory_space<vmem>>, vector<1x4x256xf32>
    %145 = vector.shape_cast %144 : vector<1x4x256xf32> to vector<4x256xf32>
    %cst_109 = arith.constant 0.000000e+00 : f32
    %146 = vector.broadcast %cst_109 : f32 to vector<4x256xf32>
    %147 = arith.cmpf one, %145, %146 : vector<4x256xf32>
    %cst_110 = arith.constant 0.000000e+00 : f32
    %148 = vector.broadcast %cst_110 : f32 to vector<4x256xf32>
    %149 = arith.select %147, %143, %148 : vector<4x256xi1>, vector<4x256xf32>
    %c16_i32_111 = arith.constant 16 : i32
    %150 = tpu.dynamic_rotate %142 by %c16_i32_111 dim 1 : vector<4x256xf32>, i32 -> vector<4x256xf32>
    %c1_112 = arith.constant 1 : index
    %c0_113 = arith.constant 0 : index
    %c0_114 = arith.constant 0 : index
    %151 = vector.load %arg2[%c1_112, %c0_113, %c0_114] : memref<9x4x256xf32, #tpu.memory_space<vmem>>, vector<1x4x256xf32>
    %152 = vector.shape_cast %151 : vector<1x4x256xf32> to vector<4x256xf32>
    %cst_115 = arith.constant 0.000000e+00 : f32
    %153 = vector.broadcast %cst_115 : f32 to vector<4x256xf32>
    %154 = arith.cmpf one, %152, %153 : vector<4x256xf32>
    %cst_116 = arith.constant 0.000000e+00 : f32
    %155 = vector.broadcast %cst_116 : f32 to vector<4x256xf32>
    %156 = arith.select %154, %150, %155 : vector<4x256xi1>, vector<4x256xf32>
    %c15_i32_117 = arith.constant 15 : i32
    %157 = tpu.dynamic_rotate %142 by %c15_i32_117 dim 1 : vector<4x256xf32>, i32 -> vector<4x256xf32>
    %c2_118 = arith.constant 2 : index
    %c0_119 = arith.constant 0 : index
    %c0_120 = arith.constant 0 : index
    %158 = vector.load %arg2[%c2_118, %c0_119, %c0_120] : memref<9x4x256xf32, #tpu.memory_space<vmem>>, vector<1x4x256xf32>
    %159 = vector.shape_cast %158 : vector<1x4x256xf32> to vector<4x256xf32>
    %cst_121 = arith.constant 0.000000e+00 : f32
    %160 = vector.broadcast %cst_121 : f32 to vector<4x256xf32>
    %161 = arith.cmpf one, %159, %160 : vector<4x256xf32>
    %cst_122 = arith.constant 0.000000e+00 : f32
    %162 = vector.broadcast %cst_122 : f32 to vector<4x256xf32>
    %163 = arith.select %161, %157, %162 : vector<4x256xi1>, vector<4x256xf32>
    %c1_i32_123 = arith.constant 1 : i32
    %164 = tpu.dynamic_rotate %142 by %c1_i32_123 dim 1 : vector<4x256xf32>, i32 -> vector<4x256xf32>
    %c3_124 = arith.constant 3 : index
    %c0_125 = arith.constant 0 : index
    %c0_126 = arith.constant 0 : index
    %165 = vector.load %arg2[%c3_124, %c0_125, %c0_126] : memref<9x4x256xf32, #tpu.memory_space<vmem>>, vector<1x4x256xf32>
    %166 = vector.shape_cast %165 : vector<1x4x256xf32> to vector<4x256xf32>
    %cst_127 = arith.constant 0.000000e+00 : f32
    %167 = vector.broadcast %cst_127 : f32 to vector<4x256xf32>
    %168 = arith.cmpf one, %166, %167 : vector<4x256xf32>
    %cst_128 = arith.constant 0.000000e+00 : f32
    %169 = vector.broadcast %cst_128 : f32 to vector<4x256xf32>
    %170 = arith.select %168, %164, %169 : vector<4x256xi1>, vector<4x256xf32>
    %c4_129 = arith.constant 4 : index
    %c0_130 = arith.constant 0 : index
    %c0_131 = arith.constant 0 : index
    %171 = vector.load %arg2[%c4_129, %c0_130, %c0_131] : memref<9x4x256xf32, #tpu.memory_space<vmem>>, vector<1x4x256xf32>
    %172 = vector.shape_cast %171 : vector<1x4x256xf32> to vector<4x256xf32>
    %cst_132 = arith.constant 0.000000e+00 : f32
    %173 = vector.broadcast %cst_132 : f32 to vector<4x256xf32>
    %174 = arith.cmpf one, %172, %173 : vector<4x256xf32>
    %cst_133 = arith.constant 0.000000e+00 : f32
    %175 = vector.broadcast %cst_133 : f32 to vector<4x256xf32>
    %176 = arith.select %174, %142, %175 : vector<4x256xi1>, vector<4x256xf32>
    %c255_i32_134 = arith.constant 255 : i32
    %177 = tpu.dynamic_rotate %142 by %c255_i32_134 dim 1 : vector<4x256xf32>, i32 -> vector<4x256xf32>
    %c5_135 = arith.constant 5 : index
    %c0_136 = arith.constant 0 : index
    %c0_137 = arith.constant 0 : index
    %178 = vector.load %arg2[%c5_135, %c0_136, %c0_137] : memref<9x4x256xf32, #tpu.memory_space<vmem>>, vector<1x4x256xf32>
    %179 = vector.shape_cast %178 : vector<1x4x256xf32> to vector<4x256xf32>
    %cst_138 = arith.constant 0.000000e+00 : f32
    %180 = vector.broadcast %cst_138 : f32 to vector<4x256xf32>
    %181 = arith.cmpf one, %179, %180 : vector<4x256xf32>
    %cst_139 = arith.constant 0.000000e+00 : f32
    %182 = vector.broadcast %cst_139 : f32 to vector<4x256xf32>
    %183 = arith.select %181, %177, %182 : vector<4x256xi1>, vector<4x256xf32>
    %c241_i32_140 = arith.constant 241 : i32
    %184 = tpu.dynamic_rotate %142 by %c241_i32_140 dim 1 : vector<4x256xf32>, i32 -> vector<4x256xf32>
    %c6_141 = arith.constant 6 : index
    %c0_142 = arith.constant 0 : index
    %c0_143 = arith.constant 0 : index
    %185 = vector.load %arg2[%c6_141, %c0_142, %c0_143] : memref<9x4x256xf32, #tpu.memory_space<vmem>>, vector<1x4x256xf32>
    %186 = vector.shape_cast %185 : vector<1x4x256xf32> to vector<4x256xf32>
    %cst_144 = arith.constant 0.000000e+00 : f32
    %187 = vector.broadcast %cst_144 : f32 to vector<4x256xf32>
    %188 = arith.cmpf one, %186, %187 : vector<4x256xf32>
    %cst_145 = arith.constant 0.000000e+00 : f32
    %189 = vector.broadcast %cst_145 : f32 to vector<4x256xf32>
    %190 = arith.select %188, %184, %189 : vector<4x256xi1>, vector<4x256xf32>
    %c240_i32_146 = arith.constant 240 : i32
    %191 = tpu.dynamic_rotate %142 by %c240_i32_146 dim 1 : vector<4x256xf32>, i32 -> vector<4x256xf32>
    %c7_147 = arith.constant 7 : index
    %c0_148 = arith.constant 0 : index
    %c0_149 = arith.constant 0 : index
    %192 = vector.load %arg2[%c7_147, %c0_148, %c0_149] : memref<9x4x256xf32, #tpu.memory_space<vmem>>, vector<1x4x256xf32>
    %193 = vector.shape_cast %192 : vector<1x4x256xf32> to vector<4x256xf32>
    %cst_150 = arith.constant 0.000000e+00 : f32
    %194 = vector.broadcast %cst_150 : f32 to vector<4x256xf32>
    %195 = arith.cmpf one, %193, %194 : vector<4x256xf32>
    %cst_151 = arith.constant 0.000000e+00 : f32
    %196 = vector.broadcast %cst_151 : f32 to vector<4x256xf32>
    %197 = arith.select %195, %191, %196 : vector<4x256xi1>, vector<4x256xf32>
    %c239_i32_152 = arith.constant 239 : i32
    %198 = tpu.dynamic_rotate %142 by %c239_i32_152 dim 1 : vector<4x256xf32>, i32 -> vector<4x256xf32>
    %c8_153 = arith.constant 8 : index
    %c0_154 = arith.constant 0 : index
    %c0_155 = arith.constant 0 : index
    %199 = vector.load %arg2[%c8_153, %c0_154, %c0_155] : memref<9x4x256xf32, #tpu.memory_space<vmem>>, vector<1x4x256xf32>
    %200 = vector.shape_cast %199 : vector<1x4x256xf32> to vector<4x256xf32>
    %cst_156 = arith.constant 0.000000e+00 : f32
    %201 = vector.broadcast %cst_156 : f32 to vector<4x256xf32>
    %202 = arith.cmpf one, %200, %201 : vector<4x256xf32>
    %cst_157 = arith.constant 0.000000e+00 : f32
    %203 = vector.broadcast %cst_157 : f32 to vector<4x256xf32>
    %204 = arith.select %202, %198, %203 : vector<4x256xi1>, vector<4x256xf32>
    %205 = tpu.concatenate %149, %156, %163, %170, %176, %183, %190, %197, %204 in 0 : vector<4x256xf32>, vector<4x256xf32>, vector<4x256xf32>, vector<4x256xf32>, vector<4x256xf32>, vector<4x256xf32>, vector<4x256xf32>, vector<4x256xf32>, vector<4x256xf32> -> vector<36x256xf32>
    %c2_158 = arith.constant 2 : index
    %c0_159 = arith.constant 0 : index
    %c0_160 = arith.constant 0 : index
    %206 = vector.load %arg3[%c2_158, %c0_159, %c0_160] : memref<3x4x36xf32, #tpu.memory_space<vmem>>, vector<1x4x36xf32>
    %207 = vector.shape_cast %206 : vector<1x4x36xf32> to vector<4x36xf32>
    %cst_161 = arith.constant dense<0.000000e+00> : vector<4x256xf32>
    %208 = tpu.matmul %207, %205, %cst_161 {dimension_numbers = #tpu.dot_dimension_numbers<[1], [0], [0], [1], [0, 0, 1, 1], [], []>} : vector<4x36xf32>, vector<36x256xf32>, vector<4x256xf32> -> vector<4x256xf32>
    %c2_162 = arith.constant 2 : index
    %c0_163 = arith.constant 0 : index
    %c0_164 = arith.constant 0 : index
    %209 = vector.load %arg4[%c2_162, %c0_163, %c0_164] : memref<3x4x1xf32, #tpu.memory_space<vmem>>, vector<1x4x1xf32>
    %210 = vector.shape_cast %209 : vector<1x4x1xf32> to vector<4x1xf32>
    %211 = vector.broadcast %210 : vector<4x1xf32> to vector<4x256xf32>
    %212 = arith.addf %208, %211 : vector<4x256xf32>
    %c0_165 = arith.constant 0 : index
    %c0_166 = arith.constant 0 : index
    %213 = vector.load %arg5[%c0_165, %c0_166] : memref<4x256xf32, #tpu.memory_space<vmem>>, vector<4x256xf32>
    tpu.vector_store %arg5[%c0_165, %c0_166], %212 {strides = array<i32>} : memref<4x256xf32, #tpu.memory_space<vmem>>, vector<4x256xf32>,
    return
  }
  func.func @transform_0(%arg0: i32) -> (i32, i32) {
    %c0_i32 = arith.constant 0 : i32
    %c0_i32_0 = arith.constant 0 : i32
    return %c0_i32, %arg0 : i32, i32
  }
  func.func @transform_1(%arg0: i32) -> (i32, i32, i32) {
    %c0_i32 = arith.constant 0 : i32
    %c0_i32_0 = arith.constant 0 : i32
    %c0_i32_1 = arith.constant 0 : i32
    %c0_i32_2 = arith.constant 0 : i32
    return %c0_i32, %c0_i32_0, %c0_i32_1 : i32, i32, i32
  }
  func.func @transform_2(%arg0: i32) -> (i32, i32, i32) {
    %c0_i32 = arith.constant 0 : i32
    %c0_i32_0 = arith.constant 0 : i32
    %c0_i32_1 = arith.constant 0 : i32
    %c0_i32_2 = arith.constant 0 : i32
    return %c0_i32, %c0_i32_0, %c0_i32_1 : i32, i32, i32
  }
  func.func @transform_3(%arg0: i32) -> (i32, i32, i32) {
    %c0_i32 = arith.constant 0 : i32
    %c0_i32_0 = arith.constant 0 : i32
    %c0_i32_1 = arith.constant 0 : i32
    %c0_i32_2 = arith.constant 0 : i32
    return %c0_i32, %c0_i32_0, %c0_i32_1 : i32, i32, i32
  }
  func.func @transform_4(%arg0: i32) -> (i32, i32) {
    %c0_i32 = arith.constant 0 : i32
    %c0_i32_0 = arith.constant 0 : i32
    return %c0_i32, %arg0 : i32, i32
  }
}

</mosaic_0001>

<llo_original>
// kernel: tpu_custom_call.1
$region0: #{tpu_custom_call.1}
  #allocation0 [shape = 'u32[]', space=smem, size = 0x4, offset = 0x4, fixed_abs, tag = 'smem constant byte address 0x4 - core index']
  #allocation1 [shape = 'u32[72,128]{1,0:T(1,128)}', space=vmem, size = 0x9000, scoped, tag = 'internal scratch']
  %s0 = inlined_call_operand.hbm [shape: f32[4,512], index: 0, kind: input, shape index: {}]
  %s1 = inlined_call_operand.hbm [shape: f32[9,4,256], index: 1, kind: input, shape index: {}]
  %s2 = inlined_call_operand.vmem [shape: f32[3,4,36], index: 2, kind: input, shape index: {}]
  %s3 = inlined_call_operand.vmem [shape: f32[3,4,1], index: 3, kind: input, shape index: {}]
  %s4 = inlined_call_operand.hbm [shape: f32[4,512], index: 4, kind: output, shape index: {}]
  %s5 = sld [smem:[#allocation0]]
  $region57: #{tpu_custom_call.1} parent=0
    _
  %s7 = ssub.s32 1, %s5
  %s8 = scalar_select 0, %s7, %s5
  $region1: #{tpu_custom_call.1} parent=0
    #allocation2 [shape = 'u8[8192]{0}', space=vmem, size = 0x2000, scoped, tag = 'input window, operand 0']
    #allocation3 [shape = 's32[2]{0}', space=sflag, size = 0x8, scoped, tag = 'scoped memory for tpu_custom_call.1']
    #allocation4 [shape = 's32[2]{0}', space=sflag, size = 0x8, scoped, tag = 'scoped memory for tpu_custom_call.1']
    #allocation5 [shape = 'u8[36864]{0}', space=vmem, size = 0x9000, scoped, tag = 'input window, operand 1, single buffered']
    #allocation6 [shape = 's32[1]{0}', space=sflag, size = 0x4, scoped, tag = 'scoped memory for tpu_custom_call.1']
    #allocation7 [shape = 'u8[8192]{0}', space=vmem, size = 0x2000, scoped, tag = 'output window, operand 0']
    %9 = vsyncpa [#allocation3], 0
    %s10 = scalar_lea.sflag [#allocation3], 1
    %11 = vsyncpa %s10, 0
    %12 = vsyncpa [#allocation6], 0
    %13 = vsyncpa [#allocation4], 0
    %s14 = scalar_lea.sflag [#allocation4], 1
    %15 = vsyncpa %s14, 0
    loop: start=0, step=1, limit=4
    $region2: #{tpu_custom_call.1} parent=1 // loop_pre_header
      _
    $region3: #{tpu_custom_call.1} parent=1 // loop_header
      %s17 = sphi 0, %s21
      %p18 = scmp.ge.s32.totalorder %s17, 4
      %s27 = sphi 0, %s29
      %s30 = sphi 0, %s27
      %s31 = sphi 0, %s30
      %s47 = sphi 0, %s31
      %s51 = sphi 0, %s51
      %s53 = sphi 0, %s51
      %s54 = sphi 0, %s53
      %s68 = sphi 0, %s54
      %s72 = sphi 0, %s72
      %s74 = sphi 0, %s72
      %s75 = sphi 0, %s74
      %s89 = sphi 0, %s75
      %s93 = sphi 0, %s93
      %s95 = sphi 0, %s93
      %s96 = sphi 0, %s95
      %s110 = sphi 0, %s96
      %s116 = sphi 0, %s118
      %s119 = sphi 0, %s116
      %s120 = sphi 0, %s119
      %s136 = sphi 0, %s120
    $region4: #{tpu_custom_call.1} parent=1 // loop_header_branch
      %20 = sbr.rel (%p18) target = $region8
    $region5: #{tpu_custom_call.1} parent=1 // loop_body
      %s22 = ssub.s32 %s17, 1
      %s23 = ssub.s32 %s17, 2
      %s24 = sadd.s32 %s17, 1
      %s25 = ssub.s32 %s17, %s24
      %p26 = scmp.eq.s32.totalorder %s25, 0
      %s28 = sadd.s32 %s27, 1
      %s29 = scalar_select %p26, %s27, %s28
      %p32 = pneg %p26
      %p33 = scmp.eq.s32.totalorder %s17, 1
      %p34 = por %p32, %p33
      %p35 = scmp.ne.s32.totalorder %s27, %s30
      %p36 = scmp.eq.s32.totalorder %s17, 0
      %p37 = por %p35, %p36
      %p38 = scmp.ne.s32.totalorder %s27, %s30
      %p39 = scmp.eq.s32.totalorder %s22, 1
      %p40 = por %p38, %p39
      %p41 = scmp.ne.s32.totalorder %s30, %s31
      %p42 = scmp.eq.s32.totalorder %s22, 0
      %p43 = por %p41, %p42
      %p44 = scmp.ne.s32.totalorder %s30, %s31
      %p45 = scmp.eq.s32.totalorder %s23, 1
      %p46 = por %p44, %p45
      %p48 = scmp.ne.s32.totalorder %s31, %s47
      %p49 = scmp.eq.s32.totalorder %s23, 0
      %p50 = por %p48, %p49
      %s52 = sadd.s32 %s51, 1
      %p55 = scmp.eq.s32.totalorder %s17, 1
      %p56 = scmp.ne.s32.totalorder %s51, %s53
      %p57 = scmp.eq.s32.totalorder %s17, 0
      %p58 = por %p56, %p57
      %p59 = scmp.ne.s32.totalorder %s51, %s53
      %p60 = scmp.eq.s32.totalorder %s22, 1
      %p61 = por %p59, %p60
      %p62 = scmp.ne.s32.totalorder %s53, %s54
      %p63 = scmp.eq.s32.totalorder %s22, 0
      %p64 = por %p62, %p63
      %p65 = scmp.ne.s32.totalorder %s53, %s54
      %p66 = scmp.eq.s32.totalorder %s23, 1
      %p67 = por %p65, %p66
      %p69 = scmp.ne.s32.totalorder %s54, %s68
      %p70 = scmp.eq.s32.totalorder %s23, 0
      %p71 = por %p69, %p70
      %s73 = sadd.s32 %s72, 1
      %p76 = scmp.eq.s32.totalorder %s17, 1
      %p77 = scmp.ne.s32.totalorder %s72, %s74
      %p78 = scmp.eq.s32.totalorder %s17, 0
      %p79 = por %p77, %p78
      %p80 = scmp.ne.s32.totalorder %s72, %s74
      %p81 = scmp.eq.s32.totalorder %s22, 1
      %p82 = por %p80, %p81
      %p83 = scmp.ne.s32.totalorder %s74, %s75
      %p84 = scmp.eq.s32.totalorder %s22, 0
      %p85 = por %p83, %p84
      %p86 = scmp.ne.s32.totalorder %s74, %s75
      %p87 = scmp.eq.s32.totalorder %s23, 1
      %p88 = por %p86, %p87
      %p90 = scmp.ne.s32.totalorder %s75, %s89
      %p91 = scmp.eq.s32.totalorder %s23, 0
      %p92 = por %p90, %p91
      %s94 = sadd.s32 %s93, 1
      %p97 = scmp.eq.s32.totalorder %s17, 1
      %p98 = scmp.ne.s32.totalorder %s93, %s95
      %p99 = scmp.eq.s32.totalorder %s17, 0
      %p100 = por %p98, %p99
      %p101 = scmp.ne.s32.totalorder %s93, %s95
      %p102 = scmp.eq.s32.totalorder %s22, 1
      %p103 = por %p101, %p102
      %p104 = scmp.ne.s32.totalorder %s95, %s96
      %p105 = scmp.eq.s32.totalorder %s22, 0
      %p106 = por %p104, %p105
      %p107 = scmp.ne.s32.totalorder %s95, %s96
      %p108 = scmp.eq.s32.totalorder %s23, 1
      %p109 = por %p107, %p108
      %p111 = scmp.ne.s32.totalorder %s96, %s110
      %p112 = scmp.eq.s32.totalorder %s23, 0
      %p113 = por %p111, %p112
      %s114 = ssub.s32 %s17, %s24
      %p115 = scmp.eq.s32.totalorder %s114, 0
      %s117 = sadd.s32 %s116, 1
      %s118 = scalar_select %p115, %s116, %s117
      %p121 = pneg %p115
      %p122 = scmp.eq.s32.totalorder %s17, 1
      %p123 = por %p121, %p122
      %p124 = scmp.ne.s32.totalorder %s116, %s119
      %p125 = scmp.eq.s32.totalorder %s17, 0
      %p126 = por %p124, %p125
      %p127 = scmp.ne.s32.totalorder %s116, %s119
      %p128 = scmp.eq.s32.totalorder %s22, 1
      %p129 = por %p127, %p128
      %p130 = scmp.ne.s32.totalorder %s119, %s120
      %p131 = scmp.eq.s32.totalorder %s22, 0
      %p132 = por %p130, %p131
      %p133 = scmp.ne.s32.totalorder %s119, %s120
      %p134 = scmp.eq.s32.totalorder %s23, 1
      %p135 = por %p133, %p134
      %p137 = scmp.ne.s32.totalorder %s120, %s136
      %p138 = scmp.eq.s32.totalorder %s23, 0
      %p139 = por %p137, %p138
      %p140 = scmp.le.s32.totalorder 1, %s17
      %p141 = scmp.lt.s32.totalorder %s17, 3
      %p142 = pnand %p140, %p141
      %p143 = pneg %p142
      // Predicated region
      $region9: #{tpu_custom_call.1} parent=5 // pred_check
        _
      $region10: #{tpu_custom_call.1} parent=5 // pred_check_branch
        %145 = sbr.rel (%p142) target = $region12
      $region11: #{tpu_custom_call.1} parent=5 // pred_region
        %s146 = ssub.s32 %s17, 1
        // Predicated region
        $region13: #{tpu_custom_call.1} parent=11 // pred_check
          %p147 = pneg %p64
        $region14: #{tpu_custom_call.1} parent=11 // pred_check_branch
          %149 = sbr.rel (%p147) target = $region16
        $region15: #{tpu_custom_call.1} parent=11 // pred_region
          %151 = vsyncadd [#allocation6], 0
          %s152 = sshll.u32 %s1, 4
          %s153 = int_to_ptr.hbm [resolvable:$true] %s152
          %s154 = sshll.u32 [#allocation5], 4
          %s155 = int_to_ptr.vmem [resolvable:$true] %s154
          %160 = dma.hbm_to_vmem [thread:$0]  %s153, 1152, %s155, [#allocation6], 128, 128, 8
        $region16: #{tpu_custom_call.1} parent=11 // pred_fallthru
          _
        // Predicated region
        $region17: #{tpu_custom_call.1} parent=11 // pred_check
          %p161 = pneg %p85
        $region18: #{tpu_custom_call.1} parent=11 // pred_check_branch
          %163 = sbr.rel (%p161) target = $region20
        $region19: #{tpu_custom_call.1} parent=11 // pred_region
          _
        $region20: #{tpu_custom_call.1} parent=11 // pred_fallthru
          _
        // Predicated region
        $region21: #{tpu_custom_call.1} parent=11 // pred_check
          %p164 = pneg %p106
        $region22: #{tpu_custom_call.1} parent=11 // pred_check_branch
          %166 = sbr.rel (%p164) target = $region24
        $region23: #{tpu_custom_call.1} parent=11 // pred_region
          _
        $region24: #{tpu_custom_call.1} parent=11 // pred_fallthru
          _
      $region12: #{tpu_custom_call.1} parent=5 // pred_fallthru
        _
      %p167 = scmp.lt.s32.totalorder %s17, 2
      // Predicated region
      $region25: #{tpu_custom_call.1} parent=5 // pred_check
        %p168 = pneg %p167
      $region26: #{tpu_custom_call.1} parent=5 // pred_check_branch
        %170 = sbr.rel (%p168) target = $region28
      $region27: #{tpu_custom_call.1} parent=5 // pred_region
        // Predicated region
        $region29: #{tpu_custom_call.1} parent=27 // pred_check
          %p171 = pneg %p37
        $region30: #{tpu_custom_call.1} parent=27 // pred_check_branch
          %173 = sbr.rel (%p171) target = $region32
        $region31: #{tpu_custom_call.1} parent=27 // pred_region
          %s174 = sand.u32 %s27, 1
          %s175 = scalar_lea.sflag [#allocation3], %s174
          %s176 = sand.u32 %s27, 1
          %s177 = smul.addr %s176, 8
          %s178 = scalar_lea.vmem [#allocation2], %s177
          %s179 = smul.u32 2, %s17
          %181 = vsyncadd %s175, 0
          %s182 = smul.addr %s179, 4
          %s183 = scalar_lea.hbm %s0, %s182
          %s185 = sshll.u32 %s183, 4
          %s186 = int_to_ptr.hbm [resolvable:$true] %s185
          %s187 = sshll.u32 %s178, 4
          %s188 = int_to_ptr.vmem [resolvable:$true] %s187
          %190 = dma.hbm_to_vmem [thread:$0]  %s186, 128, %s188, %s175
        $region32: #{tpu_custom_call.1} parent=27 // pred_fallthru
          _
      $region28: #{tpu_custom_call.1} parent=5 // pred_fallthru
        _
      %p191 = scmp.le.s32.totalorder 1, %s17
      %p192 = scmp.lt.s32.totalorder %s17, 3
      %p193 = pnand %p191, %p192
      %p194 = pneg %p193
      // Predicated region
      $region33: #{tpu_custom_call.1} parent=5 // pred_check
        _
      $region34: #{tpu_custom_call.1} parent=5 // pred_check_branch
        %196 = sbr.rel (%p193) target = $region36
      $region35: #{tpu_custom_call.1} parent=5 // pred_region
        %s197 = ssub.s32 %s17, 1
        %s198 = sand.u32 %s30, 1
        %s199 = scalar_lea.sflag [#allocation3], %s198
        %s200 = sand.u32 %s30, 1
        %s201 = smul.addr %s200, 8
        %s202 = scalar_lea.vmem [#allocation2], %s201
        // Predicated region
        $region37: #{tpu_custom_call.1} parent=35 // pred_check
          %p203 = pneg %p43
        $region38: #{tpu_custom_call.1} parent=35 // pred_check_branch
          %205 = sbr.rel (%p203) target = $region40
        $region39: #{tpu_custom_call.1} parent=35 // pred_region
          %207 = dma.done %s199, 128
        $region40: #{tpu_custom_call.1} parent=35 // pred_fallthru
          _
        // Predicated region
        $region41: #{tpu_custom_call.1} parent=35 // pred_check
          %p208 = pneg %p64
        $region42: #{tpu_custom_call.1} parent=35 // pred_check_branch
          %210 = sbr.rel (%p208) target = $region44
        $region43: #{tpu_custom_call.1} parent=35 // pred_region
          %212 = dma.done [#allocation6], 1152
        $region44: #{tpu_custom_call.1} parent=35 // pred_fallthru
          _
        %s213 = sand.u32 %s30, 1
        %s214 = scalar_lea.sflag [#allocation3], %s213
        %s215 = sand.u32 %s30, 1
        %s216 = smul.addr %s215, 8
        %s217 = scalar_lea.vmem [#allocation2], %s216
        %p218 = pneg %p43
        %p219 = pneg %p40
        %p220 = pneg %p64
        %p221 = pneg %p61
        %p222 = pneg %p85
        %p223 = pneg %p82
        %p224 = pneg %p106
        %p225 = pneg %p103
        %p226 = pneg %p132
        %p227 = pneg %p129
        %s228 = sand.u32 %s119, 1
        %s229 = scalar_lea.sflag [#allocation4], %s228
        %s230 = sand.u32 %s119, 1
        %s231 = smul.addr %s230, 8
        %s232 = scalar_lea.vmem [#allocation7], %s231
        %s233 = smul.u32 2, %s22
        %s234 = smul.u32 2, %s22
        %v235 = vld [vmem:[%s202] sm:$0xff]
        %237 = vst [vmem:[#allocation1] ss:$2 sm:$0xff] %v235
        %v238 = vld.sshfl [vmem:[#allocation1] sm:$0xff pattern:$0x75316420]
        %v239 = vld.sshfl [vmem:[#allocation1 + $0x8] sm:$0xff pattern:$0x75316420]
        %242 = vrot.lane.b32.xlu0 %v238, 17
        %v243 = vpop.permute.xlu0 %242
        %244 = vrot.lane.b32.xlu0 %v239, 17
        %v245 = vpop.permute.xlu0 %244
        %v246 = vlaneseq
        %v247 = vand.u32 %v246, 127
        %vm248 = vcmp.lt.s32.totalorder %v247, 17
        %v249 = vsel %vm248, %v243, %v245
        %v250 = vsel %vm248, %v245, %v243
        %v251 = vld [vmem:[#allocation5] sm:$0xff]
        %vm252 = vcmp.ne.f32.partialorder %v251, 0.0
        %v255 = vrot.slane %v249, 4
        %vm256 = vcmask 1043456
        %v257 = vsel %vm256, %v250, %v255
        %v259 = vsel %vm252, %v257, 0.0
        %260 = vst [vmem:[#allocation1] ss:$2 sm:$0xff] %v235
        %v261 = vld.sshfl [vmem:[#allocation1] sm:$0xff pattern:$0x75316420]
        %v262 = vld.sshfl [vmem:[#allocation1 + $0x8] sm:$0xff pattern:$0x75316420]
        %265 = vrot.lane.b32.xlu0 %v261, 16
        %v266 = vpop.permute.xlu0 %265
        %267 = vrot.lane.b32.xlu0 %v262, 16
        %v268 = vpop.permute.xlu0 %267
        %vm269 = vcmp.lt.s32.totalorder %v247, 16
        %v270 = vsel %vm269, %v266, %v268
        %v271 = vsel %vm269, %v268, %v266
        %s272 = scalar_lea.vmem [#allocation5], 8
        %v273 = vld [vmem:[%s272] sm:$0xff]
        %vm274 = vcmp.ne.f32.partialorder %v273, 0.0
        %v277 = vrot.slane %v270, 4
        %v278 = vsel %vm256, %v271, %v277
        %v280 = vsel %vm274, %v278, 0.0
        %281 = vst [vmem:[#allocation1] ss:$2 sm:$0xff] %v235
        %v282 = vld.sshfl [vmem:[#allocation1] sm:$0xff pattern:$0x75316420]
        %v283 = vld.sshfl [vmem:[#allocation1 + $0x8] sm:$0xff pattern:$0x75316420]
        %286 = vrot.lane.b32.xlu0 %v282, 15
        %v287 = vpop.permute.xlu0 %286
        %288 = vrot.lane.b32.xlu0 %v283, 15
        %v289 = vpop.permute.xlu0 %288
        %vm290 = vcmp.lt.s32.totalorder %v247, 15
        %v291 = vsel %vm290, %v287, %v289
        %v292 = vsel %vm290, %v289, %v287
        %s293 = scalar_lea.vmem [#allocation5], 16
        %v294 = vld [vmem:[%s293] sm:$0xff]
        %vm295 = vcmp.ne.f32.partialorder %v294, 0.0
        %v298 = vrot.slane %v291, 4
        %v299 = vsel %vm256, %v292, %v298
        %v301 = vsel %vm295, %v299, 0.0
        %302 = vst [vmem:[#allocation1] ss:$2 sm:$0xff] %v235
        %v303 = vld.sshfl [vmem:[#allocation1] sm:$0xff pattern:$0x75316420]
        %v304 = vld.sshfl [vmem:[#allocation1 + $0x8] sm:$0xff pattern:$0x75316420]
        %307 = vrot.lane.b32.xlu0 %v303, 1
        %v308 = vpop.permute.xlu0 %307
        %309 = vrot.lane.b32.xlu0 %v304, 1
        %v310 = vpop.permute.xlu0 %309
        %vm311 = vcmp.lt.s32.totalorder %v247, 1
        %v312 = vsel %vm311, %v308, %v310
        %v313 = vsel %vm311, %v310, %v308
        %s314 = scalar_lea.vmem [#allocation5], 24
        %v315 = vld [vmem:[%s314] sm:$0xff]
        %vm316 = vcmp.ne.f32.partialorder %v315, 0.0
        %v319 = vrot.slane %v312, 4
        %v320 = vsel %vm256, %v313, %v319
        %v322 = vsel %vm316, %v320, 0.0
        %s323 = scalar_lea.vmem [#allocation5], 32
        %v324 = vld [vmem:[%s323] sm:$0xff]
        %vm325 = vcmp.ne.f32.partialorder %v324, 0.0
        %v326 = vsel %vm325, %v235, 0.0
        %327 = vst [vmem:[#allocation1] ss:$2 sm:$0xff] %v235
        %v328 = vld.sshfl [vmem:[#allocation1] sm:$0xff pattern:$0x75316420]
        %v329 = vld.sshfl [vmem:[#allocation1 + $0x8] sm:$0xff pattern:$0x75316420]
        %332 = vrot.lane.b32.xlu0 %v328, 127
        %v333 = vpop.permute.xlu0 %332
        %334 = vrot.lane.b32.xlu0 %v329, 127
        %v335 = vpop.permute.xlu0 %334
        %vm336 = vcmp.lt.s32.totalorder %v247, 127
        %v337 = vsel %vm336, %v333, %v335
        %v338 = vsel %vm336, %v335, %v333
        %s339 = scalar_lea.vmem [#allocation5], 40
        %v340 = vld [vmem:[%s339] sm:$0xff]
        %vm341 = vcmp.ne.f32.partialorder %v340, 0.0
        %v344 = vrot.slane %v338, 4
        %v345 = vsel %vm256, %v337, %v344
        %v347 = vsel %vm341, %v345, 0.0
        %348 = vst [vmem:[#allocation1] ss:$2 sm:$0xff] %v235
        %v349 = vld.sshfl [vmem:[#allocation1] sm:$0xff pattern:$0x75316420]
        %v350 = vld.sshfl [vmem:[#allocation1 + $0x8] sm:$0xff pattern:$0x75316420]
        %353 = vrot.lane.b32.xlu0 %v349, 113
        %v354 = vpop.permute.xlu0 %353
        %355 = vrot.lane.b32.xlu0 %v350, 113
        %v356 = vpop.permute.xlu0 %355
        %vm357 = vcmp.lt.s32.totalorder %v247, 113
        %v358 = vsel %vm357, %v354, %v356
        %v359 = vsel %vm357, %v356, %v354
        %s360 = scalar_lea.vmem [#allocation5], 48
        %v361 = vld [vmem:[%s360] sm:$0xff]
        %vm362 = vcmp.ne.f32.partialorder %v361, 0.0
        %v365 = vrot.slane %v359, 4
        %v366 = vsel %vm256, %v358, %v365
        %v368 = vsel %vm362, %v366, 0.0
        %369 = vst [vmem:[#allocation1] ss:$2 sm:$0xff] %v235
        %v370 = vld.sshfl [vmem:[#allocation1] sm:$0xff pattern:$0x75316420]
        %v371 = vld.sshfl [vmem:[#allocation1 + $0x8] sm:$0xff pattern:$0x75316420]
        %374 = vrot.lane.b32.xlu0 %v370, 112
        %v375 = vpop.permute.xlu0 %374
        %376 = vrot.lane.b32.xlu0 %v371, 112
        %v377 = vpop.permute.xlu0 %376
        %vm378 = vcmp.lt.s32.totalorder %v247, 112
        %v379 = vsel %vm378, %v375, %v377
        %v380 = vsel %vm378, %v377, %v375
        %s381 = scalar_lea.vmem [#allocation5], 56
        %v382 = vld [vmem:[%s381] sm:$0xff]
        %vm383 = vcmp.ne.f32.partialorder %v382, 0.0
        %v386 = vrot.slane %v380, 4
        %v387 = vsel %vm256, %v379, %v386
        %v389 = vsel %vm383, %v387, 0.0
        %390 = vst [vmem:[#allocation1] ss:$2 sm:$0xff] %v235
        %v391 = vld.sshfl [vmem:[#allocation1] sm:$0xff pattern:$0x75316420]
        %v392 = vld.sshfl [vmem:[#allocation1 + $0x8] sm:$0xff pattern:$0x75316420]
        %395 = vrot.lane.b32.xlu0 %v391, 111
        %v396 = vpop.permute.xlu0 %395
        %397 = vrot.lane.b32.xlu0 %v392, 111
        %v398 = vpop.permute.xlu0 %397
        %vm399 = vcmp.lt.s32.totalorder %v247, 111
        %v400 = vsel %vm399, %v396, %v398
        %v401 = vsel %vm399, %v398, %v396
        %s402 = scalar_lea.vmem [#allocation5], 64
        %v403 = vld [vmem:[%s402] sm:$0xff]
        %vm404 = vcmp.ne.f32.partialorder %v403, 0.0
        %v407 = vrot.slane %v401, 4
        %v408 = vsel %vm256, %v400, %v407
        %v410 = vsel %vm404, %v408, 0.0
        %412 = vst [vmem:[#allocation1] ss:$2 sm:$0xff] %v259
        %v413 = vld.sshfl [vmem:[#allocation1] sm:$0xff pattern:$0x75316420]
        %v414 = vld.sshfl [vmem:[#allocation1 + $0x8] sm:$0xff pattern:$0x75316420]
        %s418 = scalar_lea.vmem [#allocation1], 1
        %419 = vst [vmem:[%s418] ss:$2 sm:$0xff] %v280
        %v420 = vld.sshfl [vmem:[#allocation1] sm:$0xff pattern:$0x75316420]
        %v421 = vld.sshfl [vmem:[#allocation1 + $0x8] sm:$0xff pattern:$0x75316420]
        %425 = vst [vmem:[#allocation1] ss:$2 sm:$0xff] %v301
        %v426 = vld.sshfl [vmem:[#allocation1] sm:$0xff pattern:$0x75316420]
        %v427 = vld.sshfl [vmem:[#allocation1 + $0x8] sm:$0xff pattern:$0x75316420]
        %s431 = scalar_lea.vmem [#allocation1], 1
        %432 = vst [vmem:[%s431] ss:$2 sm:$0xff] %v322
        %v433 = vld.sshfl [vmem:[#allocation1] sm:$0xff pattern:$0x75316420]
        %v434 = vld.sshfl [vmem:[#allocation1 + $0x8] sm:$0xff pattern:$0x75316420]
        %438 = vst [vmem:[#allocation1] ss:$2 sm:$0xff] %v326
        %v439 = vld.sshfl [vmem:[#allocation1] sm:$0xff pattern:$0x75316420]
        %v440 = vld.sshfl [vmem:[#allocation1 + $0x8] sm:$0xff pattern:$0x75316420]
        %s444 = scalar_lea.vmem [#allocation1], 1
        %445 = vst [vmem:[%s444] ss:$2 sm:$0xff] %v347
        %v446 = vld.sshfl [vmem:[#allocation1] sm:$0xff pattern:$0x75316420]
        %v447 = vld.sshfl [vmem:[#allocation1 + $0x8] sm:$0xff pattern:$0x75316420]
        %451 = vst [vmem:[#allocation1] ss:$2 sm:$0xff] %v368
        %v452 = vld.sshfl [vmem:[#allocation1] sm:$0xff pattern:$0x75316420]
        %v453 = vld.sshfl [vmem:[#allocation1 + $0x8] sm:$0xff pattern:$0x75316420]
        %s457 = scalar_lea.vmem [#allocation1], 1
        %458 = vst [vmem:[%s457] ss:$2 sm:$0xff] %v389
        %v459 = vld.sshfl [vmem:[#allocation1] sm:$0xff pattern:$0x75316420]
        %v460 = vld.sshfl [vmem:[#allocation1 + $0x8] sm:$0xff pattern:$0x75316420]
        %464 = vst [vmem:[#allocation1] ss:$2 sm:$0xff] %v410
        %v465 = vld.sshfl [vmem:[#allocation1] sm:$0xff pattern:$0x75316420]
        %v466 = vld.sshfl [vmem:[#allocation1 + $0x8] sm:$0xff pattern:$0x75316420]
        %v467 = vsel %vm256, %v413, %v420
        %v468 = vsel %vm256, %v414, %v421
        %v469 = vsel %vm256, %v426, %v433
        %v470 = vsel %vm256, %v427, %v434
        %v471 = vsel %vm256, %v439, %v446
        %v472 = vsel %vm256, %v440, %v447
        %v473 = vsel %vm256, %v452, %v459
        %v474 = vsel %vm256, %v453, %v460
        %v475 = vld [vmem:[%s2] sm:$0xf]
        %v476 = vld [vmem:[%s3] sm:$0xf]
        %478 = vset.pattern.permute.xlu0 0
        %479 = vperm.xlu0 %478, %v476
        %v480 = vpop.permute.xlu0 %479
        %vm482 = vcmask 293888
        %v484 = vsel %vm482, %v475, 0
        %v486 = vsel %vm256, %v465, 0
        %v488 = vsel %vm256, %v466, 0
        %490 = vmatpush.msra.mxu0 0.0
        %491 = vmatpush.msra.mxu0 0.0
        %492 = vmatpush.msra.mxu0 0.0
        %493 = vmatpush.msra.mxu0 0.0
        %494 = vmatpush.msra.mxu0 0.0
        %495 = vmatpush.msra.mxu0 0.0
        %496 = vmatpush.msra.mxu0 0.0
        %497 = vmatpush.msra.mxu0 0.0
        %498 = vmatpush.msra.mxu0 0.0
        %499 = vmatpush.msra.mxu0 0.0
        %500 = vmatpush.msra.mxu0 0.0
        %501 = vmatpush.msra.mxu0 %v486
        %502 = vmatpush.msra.mxu0 %v473
        %503 = vmatpush.msra.mxu0 %v471
        %504 = vmatpush.msra.mxu0 %v469
        %505 = vmatpush.msra.mxu0 %v467
        %506 = vmatmul.f32.gmra.mxu0 %v484
        %v507 = vpop.f32.mrf.mxu0
        %v508 = vadd.f32 %v480, %v507
        %509 = vdwg.mxu0
        %510 = vmatpush.msra.mxu0 0.0
        %511 = vmatpush.msra.mxu0 0.0
        %512 = vmatpush.msra.mxu0 0.0
        %513 = vmatpush.msra.mxu0 0.0
        %514 = vmatpush.msra.mxu0 0.0
        %515 = vmatpush.msra.mxu0 0.0
        %516 = vmatpush.msra.mxu0 0.0
        %517 = vmatpush.msra.mxu0 0.0
        %518 = vmatpush.msra.mxu0 0.0
        %519 = vmatpush.msra.mxu0 0.0
        %520 = vmatpush.msra.mxu0 0.0
        %521 = vmatpush.msra.mxu0 %v488
        %522 = vmatpush.msra.mxu0 %v474
        %523 = vmatpush.msra.mxu0 %v472
        %524 = vmatpush.msra.mxu0 %v470
        %525 = vmatpush.msra.mxu0 %v468
        %526 = vmatmul.f32.gmra.mxu0 %v484
        %v527 = vpop.f32.mrf.mxu0
        %v528 = vadd.f32 %v480, %v527
        %529 = vdwg.mxu0
        %v530 = vmax.f32 %v508, 0.0
        %v531 = vmax.f32 %v528, 0.0
        %532 = vrot.lane.b32.xlu0 %v530, 17
        %v533 = vpop.permute.xlu0 %532
        %534 = vrot.lane.b32.xlu0 %v531, 17
        %v535 = vpop.permute.xlu0 %534
        %v536 = vsel %vm248, %v533, %v535
        %v537 = vsel %vm248, %v535, %v533
        %v540 = vrot.slane %v536, 4
        %v541 = vsel %vm256, %v537, %v540
        %v543 = vsel %vm252, %v541, 0.0
        %544 = vrot.lane.b32.xlu0 %v530, 16
        %v545 = vpop.permute.xlu0 %544
        %546 = vrot.lane.b32.xlu0 %v531, 16
        %v547 = vpop.permute.xlu0 %546
        %v548 = vsel %vm269, %v545, %v547
        %v549 = vsel %vm269, %v547, %v545
        %v552 = vrot.slane %v548, 4
        %v553 = vsel %vm256, %v549, %v552
        %v555 = vsel %vm274, %v553, 0.0
        %556 = vrot.lane.b32.xlu0 %v530, 15
        %v557 = vpop.permute.xlu0 %556
        %558 = vrot.lane.b32.xlu0 %v531, 15
        %v559 = vpop.permute.xlu0 %558
        %v560 = vsel %vm290, %v557, %v559
        %v561 = vsel %vm290, %v559, %v557
        %v564 = vrot.slane %v560, 4
        %v565 = vsel %vm256, %v561, %v564
        %v567 = vsel %vm295, %v565, 0.0
        %568 = vrot.lane.b32.xlu0 %v530, 1
        %v569 = vpop.permute.xlu0 %568
        %570 = vrot.lane.b32.xlu0 %v531, 1
        %v571 = vpop.permute.xlu0 %570
        %v572 = vsel %vm311, %v569, %v571
        %v573 = vsel %vm311, %v571, %v569
        %v576 = vrot.slane %v572, 4
        %v577 = vsel %vm256, %v573, %v576
        %v579 = vsel %vm316, %v577, 0.0
        %v582 = vrot.slane %v531, 4
        %v583 = vsel %vm256, %v530, %v582
        %v585 = vsel %vm325, %v583, 0.0
        %586 = vrot.lane.b32.xlu0 %v530, 127
        %v587 = vpop.permute.xlu0 %586
        %588 = vrot.lane.b32.xlu0 %v531, 127
        %v589 = vpop.permute.xlu0 %588
        %v590 = vsel %vm336, %v587, %v589
        %v591 = vsel %vm336, %v589, %v587
        %v594 = vrot.slane %v591, 4
        %v595 = vsel %vm256, %v590, %v594
        %v597 = vsel %vm341, %v595, 0.0
        %598 = vrot.lane.b32.xlu0 %v530, 113
        %v599 = vpop.permute.xlu0 %598
        %600 = vrot.lane.b32.xlu0 %v531, 113
        %v601 = vpop.permute.xlu0 %600
        %v602 = vsel %vm357, %v599, %v601
        %v603 = vsel %vm357, %v601, %v599
        %v606 = vrot.slane %v603, 4
        %v607 = vsel %vm256, %v602, %v606
        %v609 = vsel %vm362, %v607, 0.0
        %610 = vrot.lane.b32.xlu0 %v530, 112
        %v611 = vpop.permute.xlu0 %610
        %612 = vrot.lane.b32.xlu0 %v531, 112
        %v613 = vpop.permute.xlu0 %612
        %v614 = vsel %vm378, %v611, %v613
        %v615 = vsel %vm378, %v613, %v611
        %v618 = vrot.slane %v615, 4
        %v619 = vsel %vm256, %v614, %v618
        %v621 = vsel %vm383, %v619, 0.0
        %622 = vrot.lane.b32.xlu0 %v530, 111
        %v623 = vpop.permute.xlu0 %622
        %624 = vrot.lane.b32.xlu0 %v531, 111
        %v625 = vpop.permute.xlu0 %624
        %v626 = vsel %vm399, %v623, %v625
        %v627 = vsel %vm399, %v625, %v623
        %v630 = vrot.slane %v627, 4
        %v631 = vsel %vm256, %v626, %v630
        %v633 = vsel %vm404, %v631, 0.0
        %635 = vst [vmem:[#allocation1] ss:$2 sm:$0xff] %v543
        %v636 = vld.sshfl [vmem:[#allocation1] sm:$0xff pattern:$0x75316420]
        %v637 = vld.sshfl [vmem:[#allocation1 + $0x8] sm:$0xff pattern:$0x75316420]
        %s641 = scalar_lea.vmem [#allocation1], 1
        %642 = vst [vmem:[%s641] ss:$2 sm:$0xff] %v555
        %v643 = vld.sshfl [vmem:[#allocation1] sm:$0xff pattern:$0x75316420]
        %v644 = vld.sshfl [vmem:[#allocation1 + $0x8] sm:$0xff pattern:$0x75316420]
        %648 = vst [vmem:[#allocation1] ss:$2 sm:$0xff] %v567
        %v649 = vld.sshfl [vmem:[#allocation1] sm:$0xff pattern:$0x75316420]
        %v650 = vld.sshfl [vmem:[#allocation1 + $0x8] sm:$0xff pattern:$0x75316420]
        %s654 = scalar_lea.vmem [#allocation1], 1
        %655 = vst [vmem:[%s654] ss:$2 sm:$0xff] %v579
        %v656 = vld.sshfl [vmem:[#allocation1] sm:$0xff pattern:$0x75316420]
        %v657 = vld.sshfl [vmem:[#allocation1 + $0x8] sm:$0xff pattern:$0x75316420]
        %661 = vst [vmem:[#allocation1] ss:$2 sm:$0xff] %v585
        %v662 = vld.sshfl [vmem:[#allocation1] sm:$0xff pattern:$0x75316420]
        %v663 = vld.sshfl [vmem:[#allocation1 + $0x8] sm:$0xff pattern:$0x75316420]
        %s667 = scalar_lea.vmem [#allocation1], 1
        %668 = vst [vmem:[%s667] ss:$2 sm:$0xff] %v597
        %v669 = vld.sshfl [vmem:[#allocation1] sm:$0xff pattern:$0x75316420]
        %v670 = vld.sshfl [vmem:[#allocation1 + $0x8] sm:$0xff pattern:$0x75316420]
        %674 = vst [vmem:[#allocation1] ss:$2 sm:$0xff] %v609
        %v675 = vld.sshfl [vmem:[#allocation1] sm:$0xff pattern:$0x75316420]
        %v676 = vld.sshfl [vmem:[#allocation1 + $0x8] sm:$0xff pattern:$0x75316420]
        %s680 = scalar_lea.vmem [#allocation1], 1
        %681 = vst [vmem:[%s680] ss:$2 sm:$0xff] %v621
        %v682 = vld.sshfl [vmem:[#allocation1] sm:$0xff pattern:$0x75316420]
        %v683 = vld.sshfl [vmem:[#allocation1 + $0x8] sm:$0xff pattern:$0x75316420]
        %687 = vst [vmem:[#allocation1] ss:$2 sm:$0xff] %v633
        %v688 = vld.sshfl [vmem:[#allocation1] sm:$0xff pattern:$0x75316420]
        %v689 = vld.sshfl [vmem:[#allocation1 + $0x8] sm:$0xff pattern:$0x75316420]
        %v690 = vsel %vm256, %v636, %v643
        %v691 = vsel %vm256, %v637, %v644
        %v692 = vsel %vm256, %v649, %v656
        %v693 = vsel %vm256, %v650, %v657
        %v694 = vsel %vm256, %v662, %v669
        %v695 = vsel %vm256, %v663, %v670
        %v696 = vsel %vm256, %v675, %v682
        %v697 = vsel %vm256, %v676, %v683
        %s698 = scalar_lea.vmem %s2, 4
        %v699 = vld [vmem:[%s698] sm:$0xf]
        %s700 = scalar_lea.vmem %s3, 4
        %v701 = vld [vmem:[%s700] sm:$0xf]
        %703 = vset.pattern.permute.xlu0 0
        %704 = vperm.xlu0 %703, %v701
        %v705 = vpop.permute.xlu0 %704
        %v708 = vsel %vm482, %v699, 0
        %v710 = vsel %vm256, %v688, 0
        %v712 = vsel %vm256, %v689, 0
        %714 = vmatpush.msra.mxu0 0.0
        %715 = vmatpush.msra.mxu0 0.0
        %716 = vmatpush.msra.mxu0 0.0
        %717 = vmatpush.msra.mxu0 0.0
        %718 = vmatpush.msra.mxu0 0.0
        %719 = vmatpush.msra.mxu0 0.0
        %720 = vmatpush.msra.mxu0 0.0
        %721 = vmatpush.msra.mxu0 0.0
        %722 = vmatpush.msra.mxu0 0.0
        %723 = vmatpush.msra.mxu0 0.0
        %724 = vmatpush.msra.mxu0 0.0
        %725 = vmatpush.msra.mxu0 %v710
        %726 = vmatpush.msra.mxu0 %v696
        %727 = vmatpush.msra.mxu0 %v694
        %728 = vmatpush.msra.mxu0 %v692
        %729 = vmatpush.msra.mxu0 %v690
        %730 = vmatmul.f32.gmra.mxu0 %v708
        %v731 = vpop.f32.mrf.mxu0
        %v732 = vadd.f32 %v705, %v731
        %733 = vdwg.mxu0
        %734 = vmatpush.msra.mxu0 0.0
        %735 = vmatpush.msra.mxu0 0.0
        %736 = vmatpush.msra.mxu0 0.0
        %737 = vmatpush.msra.mxu0 0.0
        %738 = vmatpush.msra.mxu0 0.0
        %739 = vmatpush.msra.mxu0 0.0
        %740 = vmatpush.msra.mxu0 0.0
        %741 = vmatpush.msra.mxu0 0.0
        %742 = vmatpush.msra.mxu0 0.0
        %743 = vmatpush.msra.mxu0 0.0
        %744 = vmatpush.msra.mxu0 0.0
        %745 = vmatpush.msra.mxu0 %v712
        %746 = vmatpush.msra.mxu0 %v697
        %747 = vmatpush.msra.mxu0 %v695
        %748 = vmatpush.msra.mxu0 %v693
        %749 = vmatpush.msra.mxu0 %v691
        %750 = vmatmul.f32.gmra.mxu0 %v708
        %v751 = vpop.f32.mrf.mxu0
        %v752 = vadd.f32 %v705, %v751
        %753 = vdwg.mxu0
        %754 = vrot.lane.b32.xlu0 %v732, 17
        %v755 = vpop.permute.xlu0 %754
        %756 = vrot.lane.b32.xlu0 %v752, 17
        %v757 = vpop.permute.xlu0 %756
        %v758 = vsel %vm248, %v755, %v757
        %v759 = vsel %vm248, %v757, %v755
        %v762 = vrot.slane %v758, 4
        %v763 = vsel %vm256, %v759, %v762
        %v765 = vsel %vm252, %v763, 0.0
        %766 = vrot.lane.b32.xlu0 %v732, 16
        %v767 = vpop.permute.xlu0 %766
        %768 = vrot.lane.b32.xlu0 %v752, 16
        %v769 = vpop.permute.xlu0 %768
        %v770 = vsel %vm269, %v767, %v769
        %v771 = vsel %vm269, %v769, %v767
        %v774 = vrot.slane %v770, 4
        %v775 = vsel %vm256, %v771, %v774
        %v777 = vsel %vm274, %v775, 0.0
        %778 = vrot.lane.b32.xlu0 %v732, 15
        %v779 = vpop.permute.xlu0 %778
        %780 = vrot.lane.b32.xlu0 %v752, 15
        %v781 = vpop.permute.xlu0 %780
        %v782 = vsel %vm290, %v779, %v781
        %v783 = vsel %vm290, %v781, %v779
        %v786 = vrot.slane %v782, 4
        %v787 = vsel %vm256, %v783, %v786
        %v789 = vsel %vm295, %v787, 0.0
        %790 = vrot.lane.b32.xlu0 %v732, 1
        %v791 = vpop.permute.xlu0 %790
        %792 = vrot.lane.b32.xlu0 %v752, 1
        %v793 = vpop.permute.xlu0 %792
        %v794 = vsel %vm311, %v791, %v793
        %v795 = vsel %vm311, %v793, %v791
        %v798 = vrot.slane %v794, 4
        %v799 = vsel %vm256, %v795, %v798
        %v801 = vsel %vm316, %v799, 0.0
        %v804 = vrot.slane %v752, 4
        %v805 = vsel %vm256, %v732, %v804
        %v807 = vsel %vm325, %v805, 0.0
        %808 = vrot.lane.b32.xlu0 %v732, 127
        %v809 = vpop.permute.xlu0 %808
        %810 = vrot.lane.b32.xlu0 %v752, 127
        %v811 = vpop.permute.xlu0 %810
        %v812 = vsel %vm336, %v809, %v811
        %v813 = vsel %vm336, %v811, %v809
        %v816 = vrot.slane %v813, 4
        %v817 = vsel %vm256, %v812, %v816
        %v819 = vsel %vm341, %v817, 0.0
        %820 = vrot.lane.b32.xlu0 %v732, 113
        %v821 = vpop.permute.xlu0 %820
        %822 = vrot.lane.b32.xlu0 %v752, 113
        %v823 = vpop.permute.xlu0 %822
        %v824 = vsel %vm357, %v821, %v823
        %v825 = vsel %vm357, %v823, %v821
        %v828 = vrot.slane %v825, 4
        %v829 = vsel %vm256, %v824, %v828
        %v831 = vsel %vm362, %v829, 0.0
        %832 = vrot.lane.b32.xlu0 %v732, 112
        %v833 = vpop.permute.xlu0 %832
        %834 = vrot.lane.b32.xlu0 %v752, 112
        %v835 = vpop.permute.xlu0 %834
        %v836 = vsel %vm378, %v833, %v835
        %v837 = vsel %vm378, %v835, %v833
        %v840 = vrot.slane %v837, 4
        %v841 = vsel %vm256, %v836, %v840
        %v843 = vsel %vm383, %v841, 0.0
        %844 = vrot.lane.b32.xlu0 %v732, 111
        %v845 = vpop.permute.xlu0 %844
        %846 = vrot.lane.b32.xlu0 %v752, 111
        %v847 = vpop.permute.xlu0 %846
        %v848 = vsel %vm399, %v845, %v847
        %v849 = vsel %vm399, %v847, %v845
        %v852 = vrot.slane %v849, 4
        %v853 = vsel %vm256, %v848, %v852
        %v855 = vsel %vm404, %v853, 0.0
        %857 = vst [vmem:[#allocation1] ss:$2 sm:$0xff] %v765
        %v858 = vld.sshfl [vmem:[#allocation1] sm:$0xff pattern:$0x75316420]
        %v859 = vld.sshfl [vmem:[#allocation1 + $0x8] sm:$0xff pattern:$0x75316420]
        %s863 = scalar_lea.vmem [#allocation1], 1
        %864 = vst [vmem:[%s863] ss:$2 sm:$0xff] %v777
        %v865 = vld.sshfl [vmem:[#allocation1] sm:$0xff pattern:$0x75316420]
        %v866 = vld.sshfl [vmem:[#allocation1 + $0x8] sm:$0xff pattern:$0x75316420]
        %870 = vst [vmem:[#allocation1] ss:$2 sm:$0xff] %v789
        %v871 = vld.sshfl [vmem:[#allocation1] sm:$0xff pattern:$0x75316420]
        %v872 = vld.sshfl [vmem:[#allocation1 + $0x8] sm:$0xff pattern:$0x75316420]
        %s876 = scalar_lea.vmem [#allocation1], 1
        %877 = vst [vmem:[%s876] ss:$2 sm:$0xff] %v801
        %v878 = vld.sshfl [vmem:[#allocation1] sm:$0xff pattern:$0x75316420]
        %v879 = vld.sshfl [vmem:[#allocation1 + $0x8] sm:$0xff pattern:$0x75316420]
        %883 = vst [vmem:[#allocation1] ss:$2 sm:$0xff] %v807
        %v884 = vld.sshfl [vmem:[#allocation1] sm:$0xff pattern:$0x75316420]
        %v885 = vld.sshfl [vmem:[#allocation1 + $0x8] sm:$0xff pattern:$0x75316420]
        %s889 = scalar_lea.vmem [#allocation1], 1
        %890 = vst [vmem:[%s889] ss:$2 sm:$0xff] %v819
        %v891 = vld.sshfl [vmem:[#allocation1] sm:$0xff pattern:$0x75316420]
        %v892 = vld.sshfl [vmem:[#allocation1 + $0x8] sm:$0xff pattern:$0x75316420]
        %896 = vst [vmem:[#allocation1] ss:$2 sm:$0xff] %v831
        %v897 = vld.sshfl [vmem:[#allocation1] sm:$0xff pattern:$0x75316420]
        %v898 = vld.sshfl [vmem:[#allocation1 + $0x8] sm:$0xff pattern:$0x75316420]
        %s902 = scalar_lea.vmem [#allocation1], 1
        %903 = vst [vmem:[%s902] ss:$2 sm:$0xff] %v843
        %v904 = vld.sshfl [vmem:[#allocation1] sm:$0xff pattern:$0x75316420]
        %v905 = vld.sshfl [vmem:[#allocation1 + $0x8] sm:$0xff pattern:$0x75316420]
        %909 = vst [vmem:[#allocation1] ss:$2 sm:$0xff] %v855
        %v910 = vld.sshfl [vmem:[#allocation1] sm:$0xff pattern:$0x75316420]
        %v911 = vld.sshfl [vmem:[#allocation1 + $0x8] sm:$0xff pattern:$0x75316420]
        %v912 = vsel %vm256, %v858, %v865
        %v913 = vsel %vm256, %v859, %v866
        %v914 = vsel %vm256, %v871, %v878
        %v915 = vsel %vm256, %v872, %v879
        %v916 = vsel %vm256, %v884, %v891
        %v917 = vsel %vm256, %v885, %v892
        %v918 = vsel %vm256, %v897, %v904
        %v919 = vsel %vm256, %v898, %v905
        %s920 = scalar_lea.vmem %s2, 8
        %v921 = vld [vmem:[%s920] sm:$0xf]
        %s922 = scalar_lea.vmem %s3, 8
        %v923 = vld [vmem:[%s922] sm:$0xf]
        %925 = vset.pattern.permute.xlu0 0
        %926 = vperm.xlu0 %925, %v923
        %v927 = vpop.permute.xlu0 %926
        %v930 = vsel %vm482, %v921, 0
        %v932 = vsel %vm256, %v910, 0
        %v934 = vsel %vm256, %v911, 0
        %936 = vmatpush.msra.mxu0 0.0
        %937 = vmatpush.msra.mxu0 0.0
        %938 = vmatpush.msra.mxu0 0.0
        %939 = vmatpush.msra.mxu0 0.0
        %940 = vmatpush.msra.mxu0 0.0
        %941 = vmatpush.msra.mxu0 0.0
        %942 = vmatpush.msra.mxu0 0.0
        %943 = vmatpush.msra.mxu0 0.0
        %944 = vmatpush.msra.mxu0 0.0
        %945 = vmatpush.msra.mxu0 0.0
        %946 = vmatpush.msra.mxu0 0.0
        %947 = vmatpush.msra.mxu0 %v932
        %948 = vmatpush.msra.mxu0 %v918
        %949 = vmatpush.msra.mxu0 %v916
        %950 = vmatpush.msra.mxu0 %v914
        %951 = vmatpush.msra.mxu0 %v912
        %952 = vmatmul.f32.gmra.mxu0 %v930
        %v953 = vpop.f32.mrf.mxu0
        %v954 = vadd.f32 %v927, %v953
        %955 = vdwg.mxu0
        %956 = vmatpush.msra.mxu0 0.0
        %957 = vmatpush.msra.mxu0 0.0
        %958 = vmatpush.msra.mxu0 0.0
        %959 = vmatpush.msra.mxu0 0.0
        %960 = vmatpush.msra.mxu0 0.0
        %961 = vmatpush.msra.mxu0 0.0
        %962 = vmatpush.msra.mxu0 0.0
        %963 = vmatpush.msra.mxu0 0.0
        %964 = vmatpush.msra.mxu0 0.0
        %965 = vmatpush.msra.mxu0 0.0
        %966 = vmatpush.msra.mxu0 0.0
        %967 = vmatpush.msra.mxu0 %v934
        %968 = vmatpush.msra.mxu0 %v919
        %969 = vmatpush.msra.mxu0 %v917
        %970 = vmatpush.msra.mxu0 %v915
        %971 = vmatpush.msra.mxu0 %v913
        %972 = vmatmul.f32.gmra.mxu0 %v930
        %v973 = vpop.f32.mrf.mxu0
        %v974 = vadd.f32 %v927, %v973
        %975 = vdwg.mxu0
        %v978 = vrot.slane %v974, 4
        %v979 = vsel %vm256, %v954, %v978
        %981 = vst [vmem:[%s232] sm:$0xff] %v979
        %s982 = sand.u32 %s119, 1
        %s983 = scalar_lea.sflag [#allocation4], %s982
        %s984 = sand.u32 %s119, 1
        %s985 = smul.addr %s984, 8
        %s986 = scalar_lea.vmem [#allocation7], %s985
        // Predicated region
        $region45: #{tpu_custom_call.1} parent=35 // pred_check
          %p987 = pneg %p129
        $region46: #{tpu_custom_call.1} parent=35 // pred_check_branch
          %989 = sbr.rel (%p987) target = $region48
        $region47: #{tpu_custom_call.1} parent=35 // pred_region
          %s990 = smul.u32 2, %s22
          %992 = vsyncadd %s983, 0
          %s993 = smul.addr %s990, 4
          %s994 = scalar_lea.hbm %s4, %s993
          %s996 = sshll.u32 %s986, 4
          %s997 = int_to_ptr.vmem [resolvable:$true] %s996
          %s998 = sshll.u32 %s994, 4
          %s999 = int_to_ptr.hbm [resolvable:$true] %s998
          %1001 = dma.vmem_to_hbm [thread:$0]  %s997, 128, %s999, %s983
        $region48: #{tpu_custom_call.1} parent=35 // pred_fallthru
          _
      $region36: #{tpu_custom_call.1} parent=5 // pred_fallthru
        _
      %p1002 = scmp.le.s32.totalorder 2, %s17
      // Predicated region
      $region49: #{tpu_custom_call.1} parent=5 // pred_check
        %p1003 = pneg %p1002
      $region50: #{tpu_custom_call.1} parent=5 // pred_check_branch
        %1005 = sbr.rel (%p1003) target = $region52
      $region51: #{tpu_custom_call.1} parent=5 // pred_region
        %s1006 = ssub.s32 %s17, 2
        // Predicated region
        $region53: #{tpu_custom_call.1} parent=51 // pred_check
          %p1007 = pneg %p135
        $region54: #{tpu_custom_call.1} parent=51 // pred_check_branch
          %1009 = sbr.rel (%p1007) target = $region56
        $region55: #{tpu_custom_call.1} parent=51 // pred_region
          %s1010 = sand.u32 %s120, 1
          %s1011 = scalar_lea.sflag [#allocation4], %s1010
          %s1012 = sand.u32 %s120, 1
          %s1013 = smul.addr %s1012, 8
          %s1014 = scalar_lea.vmem [#allocation7], %s1013
          %1016 = dma.done %s1011, 128
        $region56: #{tpu_custom_call.1} parent=51 // pred_fallthru
          _
      $region52: #{tpu_custom_call.1} parent=5 // pred_fallthru
        _
    $region6: #{tpu_custom_call.1} parent=1 // loop_footer
      %s21 = sadd.s32 1, %s17
    $region7: #{tpu_custom_call.1} parent=1 // loop_footer_branch
      %16 = sbr.rel target = $region3
    $region8: #{tpu_custom_call.1} parent=1 // loop_exit
      _
    %1017 = vsyncpa [#allocation3], 1
    %s1018 = scalar_lea.sflag [#allocation3], 1
    %1019 = vsyncpa %s1018, 1
    %1020 = vsyncpa [#allocation6], 1
    %1021 = vsyncpa [#allocation4], 1
    %s1022 = scalar_lea.sflag [#allocation4], 1
    %1023 = vsyncpa %s1022, 1

</llo_original>
